<compile_context>
chip_gen: v5e
topology: v5e:2x2
jax: 0.10.0
libtpu: 0.0.40
codegen_flags: <defaults>
</compile_context>

<pallas_src>
import jax
import jax.numpy as jnp
from jax import lax
from jax.experimental import pallas as pl
from jax.experimental.pallas import tpu as pltpu

_LANE = 128      # vreg lane width  (last dim)
_SUBLANE = 8     # vreg sublane width (second-to-last dim)


def _round_up(x, m):
    return (x + m - 1) // m * m


def _cgcn_kernel(inp_ref, adj_ref, w1_ref, w2_ref, out_ref):
    """One graph per grid step. All operands are padded, VMEM-resident tiles."""
    # gen_adj, without materializing adj_hat:
    #   adj_hat[i, j] = d[i] * A[j, i] * d[j],  d = rsqrt(rowsum(A))
    #   => adj_hat @ s = d * (A^T @ (d * s))   (A^T folded into the MXU dot)
    A = adj_ref[...]                                    # f32 (Np, Np)
    rowsum = jnp.sum(A, axis=1, keepdims=True)          # (Np, 1)
    d = lax.rsqrt(rowsum)                               # f32; padded rows have a
                                                        # self-loop -> rowsum = 1
    A_bf = A.astype(jnp.bfloat16)                       # MXU operand only
    tn_dims = (((0,), (0,)), ((), ()))                  # contract lhs axis 0 (A^T)

    x = inp_ref[...]                                    # bf16 (Np, Cin_p)

    # gc1: support = x @ W1 ; out = adj_hat @ support
    s1 = jnp.dot(x, w1_ref[...], preferred_element_type=jnp.float32)
    h1 = d * lax.dot_general(A_bf, (d * s1).astype(jnp.bfloat16), tn_dims,
                             preferred_element_type=jnp.float32)

    # LeakyReLU(0.2) in f32
    h1 = jnp.where(h1 > 0, h1, 0.2 * h1)

    # gc2
    s2 = jnp.dot(h1.astype(jnp.bfloat16), w2_ref[...],
                 preferred_element_type=jnp.float32)
    h2 = d * lax.dot_general(A_bf, (d * s2).astype(jnp.bfloat16), tn_dims,
                             preferred_element_type=jnp.float32)

    # l2norm along last dim: x / (||x||_2 + 1e-12); reciprocal on the EUP.
    norm = jnp.sqrt(jnp.sum(h2 * h2, axis=-1, keepdims=True)) + 1e-12
    out_ref[...] = (h2 * pl.reciprocal(norm, approx=True)).astype(out_ref.dtype)


def c_gcn_forward(inp_tuple, adj_all, w_gc1, w_gc2):
    """Mirrors C_GCN.forward(inp); inp_tuple[0] is (N, Cin) or batched (B, N, Cin)."""
    inp = inp_tuple[0]
    batched = inp.ndim == 3
    x = inp if batched else inp[None]
    b, n, cin = x.shape
    h1 = w_gc1.shape[1]
    emb = w_gc2.shape[1]
    assert adj_all.shape == (n, n)
    assert w_gc1.shape == (cin, h1)
    assert w_gc2.shape == (h1, emb)

    n_p = _round_up(n, _SUBLANE)
    cin_p = _round_up(cin, _LANE)
    h1_p = _round_up(h1, _LANE)
    emb_p = _round_up(emb, _LANE)

    # Zero-pad features/weights so every MXU tile & the output store are
    # lane-dense (multiples of 128); MXU operands cast to bf16 here.
    x_p = jnp.zeros((b, n_p, cin_p), jnp.bfloat16)
    x_p = x_p.at[:, :n, :cin].set(x.astype(jnp.bfloat16))
    w1_p = jnp.zeros((cin_p, h1_p), jnp.bfloat16)
    w1_p = w1_p.at[:cin, :h1].set(w_gc1.astype(jnp.bfloat16))
    w2_p = jnp.zeros((h1_p, emb_p), jnp.bfloat16)
    w2_p = w2_p.at[:h1, :emb].set(w_gc2.astype(jnp.bfloat16))
    # Adjacency stays f32 (rowsum/rsqrt precision). Padded nodes get identity
    # self-loops so rsqrt(rowsum) stays finite; they are decoupled from real
    # nodes and carry zero features, so real rows are bit-equivalent.
    adj_p = jnp.eye(n_p, dtype=jnp.float32)
    adj_p = adj_p.at[:n, :n].set(adj_all.astype(jnp.float32))

    vmem = pltpu.MemorySpace.VMEM
    flops = 2 * b * (n_p * cin_p * h1_p + n_p * n_p * h1_p
                     + n_p * h1_p * emb_p + n_p * n_p * emb_p)
    bytes_accessed = (b * n_p * cin_p * 2          # inp (bf16), per graph
                      + n_p * n_p * 4              # adjacency (f32), fetched once
                      + cin_p * h1_p * 2           # W1 (bf16), fetched once
                      + h1_p * emb_p * 2           # W2 (bf16), fetched once
                      + b * n_p * emb_p * 4)       # output (f32), per graph
    cost = pl.CostEstimate(flops=flops, transcendentals=2 * b * n_p,
                           bytes_accessed=bytes_accessed)

    out_p = pl.pallas_call(
        _cgcn_kernel,
        out_shape=jax.ShapeDtypeStruct((b, n_p, emb_p), jnp.float32),
        grid=(b,),
        in_specs=[
            pl.BlockSpec((None, n_p, cin_p), lambda i: (i, 0, 0),
                         memory_space=vmem),
            pl.BlockSpec((n_p, n_p), lambda i: (0, 0), memory_space=vmem),
            pl.BlockSpec((cin_p, h1_p), lambda i: (0, 0), memory_space=vmem),
            pl.BlockSpec((h1_p, emb_p), lambda i: (0, 0), memory_space=vmem),
        ],
        out_specs=pl.BlockSpec((None, n_p, emb_p), lambda i: (i, 0, 0),
                               memory_space=vmem),
        compiler_params=pltpu.CompilerParams(
            dimension_semantics=("parallel",)),
        cost_estimate=cost,
    )(x_p, adj_p, w1_p, w2_p)

    out = out_p[:, :n, :emb]
    return out if batched else out[0]


def init_params(key, num_classes, in_channel, embed_size):
    """Deterministic parameter construction matching the module's __init__."""
    k_adj, k_w1, k_w2 = jax.random.split(key, 3)

    # GraphConvolution.reset_parameters: uniform(-stdv, stdv), stdv=1/sqrt(out)
    h1 = embed_size // 2
    stdv1 = 1.0 / jnp.sqrt(jnp.float32(h1))
    stdv2 = 1.0 / jnp.sqrt(jnp.float32(embed_size))
    w_gc1 = jax.random.uniform(k_w1, (in_channel, h1), jnp.float32,
                               minval=-stdv1, maxval=stdv1)
    w_gc2 = jax.random.uniform(k_w2, (h1, embed_size), jnp.float32,
                               minval=-stdv2, maxval=stdv2)

    # Synthetic strictly-positive adjacency (stand-in for gen_A_concept output)
    # so that rowsum^-0.5 is well defined, with self-loops like ML-GCN.
    a = jax.random.uniform(k_adj, (num_classes, num_classes), jnp.float32,
                           minval=0.05, maxval=1.0)
    adj_all = a + jnp.eye(num_classes, dtype=jnp.float32)
    return adj_all, w_gc1, w_gc2


def reference_forward(inp_tuple, adj_all, w_gc1, w_gc2):
    """Plain-JAX reference with the same bf16-operand / f32-accumulate recipe."""
    inp = inp_tuple[0]
    batched = inp.ndim == 3
    x = (inp if batched else inp[None]).astype(jnp.bfloat16)
    w1 = w_gc1.astype(jnp.bfloat16)
    w2 = w_gc2.astype(jnp.bfloat16)
    A = adj_all.astype(jnp.float32)
    d = lax.rsqrt(jnp.sum(A, axis=1, keepdims=True))
    A_bf = A.astype(jnp.bfloat16)

    def one(xg):
        s1 = jnp.dot(xg, w1, preferred_element_type=jnp.float32)
        h = d * jnp.dot(A_bf.T, (d * s1).astype(jnp.bfloat16),
                        preferred_element_type=jnp.float32)
        h = jnp.where(h > 0, h, 0.2 * h)
        s2 = jnp.dot(h.astype(jnp.bfloat16), w2,
                     preferred_element_type=jnp.float32)
        h = d * jnp.dot(A_bf.T, (d * s2).astype(jnp.bfloat16),
                        preferred_element_type=jnp.float32)
        norm = jnp.sqrt(jnp.sum(h * h, axis=-1, keepdims=True)) + 1e-12
        return h / norm

    out = jax.vmap(one)(x)
    return out if batched else out[0]


if __name__ == "__main__":
    batch = 2            # graphs sharing adjacency/weights (amortizes the call)
    num_classes = 8      # concept nodes
    in_channel = 32      # word-embedding dim (300 in the original config)
    embed_size = 32      # joint embedding size

    key = jax.random.PRNGKey(0)
    k_params, k_inp = jax.random.split(key)

    adj_all, w_gc1, w_gc2 = init_params(k_params, num_classes, in_channel,
                                        embed_size)
    # forward receives a tuple / list and uses inp[0]
    node_feats = jax.random.normal(k_inp, (batch, num_classes, in_channel),
                                   jnp.float32)
    inp = (node_feats,)

    fwd = jax.jit(c_gcn_forward)
    out = jax.block_until_ready(fwd(inp, adj_all, w_gc1, w_gc2))
    ref = jax.block_until_ready(reference_forward(inp, adj_all, w_gc1, w_gc2))

    assert out.shape == (batch, num_classes, embed_size)
    assert jnp.allclose(out, ref, atol=1e-2, rtol=1e-2), (
        "mismatch vs reference, max abs err = "
        f"{float(jnp.max(jnp.abs(out - ref)))}")

    print("KERNEL_OK")
</pallas_src>

<mosaic_0001>
module attributes {stable_mosaic.version = 11 : i64} {
  func.func @_cgcn_kernel(%arg0: i32, %arg1: memref<1x8x128xbf16, #tpu.memory_space<vmem>>, %arg2: memref<8x8xf32, #tpu.memory_space<vmem>>, %arg3: memref<128x128xbf16, #tpu.memory_space<vmem>>, %arg4: memref<128x128xbf16, #tpu.memory_space<vmem>>, %arg5: memref<1x8x128xf32, #tpu.memory_space<vmem>>) attributes {dimension_semantics = [#tpu.dimension_semantics<parallel>], iteration_bounds = array<i64: 2>, scalar_prefetch = 0 : i64, scratch_operands = 0 : i64, tpu.core_type = #tpu.core_type<tc>, window_params = [{transform_indices = @transform_0, window_bounds = array<i64: 1, 8, 128>}, {pipeline_mode = #tpu.pipeline_mode<synchronous>, transform_indices = @transform_1, window_bounds = array<i64: 8, 8>}, {pipeline_mode = #tpu.pipeline_mode<synchronous>, transform_indices = @transform_2, window_bounds = array<i64: 128, 128>}, {pipeline_mode = #tpu.pipeline_mode<synchronous>, transform_indices = @transform_3, window_bounds = array<i64: 128, 128>}, {transform_indices = @transform_4, window_bounds = array<i64: 1, 8, 128>}]} {
    %c0 = arith.constant 0 : index
    %c0_0 = arith.constant 0 : index
    %0 = vector.load %arg2[%c0, %c0_0] : memref<8x8xf32, #tpu.memory_space<vmem>>, vector<8x8xf32>
    %cst = arith.constant dense<0.000000e+00> : vector<8xf32>
    %1 = vector.multi_reduction <add>, %0, %cst [1] : vector<8x8xf32> to vector<8xf32>
    %2 = vector.shape_cast %1 : vector<8xf32> to vector<8x1xf32>
    %3 = math.rsqrt %2 : vector<8x1xf32>
    %4 = arith.truncf %0 : vector<8x8xf32> to vector<8x8xbf16>
    %c0_1 = arith.constant 0 : index
    %c0_2 = arith.constant 0 : index
    %c0_3 = arith.constant 0 : index
    %5 = vector.load %arg1[%c0_1, %c0_2, %c0_3] : memref<1x8x128xbf16, #tpu.memory_space<vmem>>, vector<1x8x128xbf16>
    %6 = vector.shape_cast %5 : vector<1x8x128xbf16> to vector<8x128xbf16>
    %c0_4 = arith.constant 0 : index
    %c0_5 = arith.constant 0 : index
    %7 = vector.load %arg3[%c0_4, %c0_5] : memref<128x128xbf16, #tpu.memory_space<vmem>>, vector<128x128xbf16>
    %cst_6 = arith.constant dense<0.000000e+00> : vector<8x128xf32>
    %8 = tpu.matmul %6, %7, %cst_6 {dimension_numbers = #tpu.dot_dimension_numbers<[1], [0], [0], [1], [0, 0, 1, 1], [], []>} : vector<8x128xbf16>, vector<128x128xbf16>, vector<8x128xf32> -> vector<8x128xf32>
    %9 = vector.broadcast %3 : vector<8x1xf32> to vector<8x128xf32>
    %10 = arith.mulf %9, %8 : vector<8x128xf32>
    %11 = arith.truncf %10 : vector<8x128xf32> to vector<8x128xbf16>
    %cst_7 = arith.constant dense<0.000000e+00> : vector<8x128xf32>
    %12 = tpu.matmul %4, %11, %cst_7 {dimension_numbers = #tpu.dot_dimension_numbers<[0], [0], [1], [1], [0, 1, 1, 1], [], []>} : vector<8x8xbf16>, vector<8x128xbf16>, vector<8x128xf32> -> vector<8x128xf32>
    %13 = vector.broadcast %3 : vector<8x1xf32> to vector<8x128xf32>
    %14 = arith.mulf %13, %12 : vector<8x128xf32>
    %cst_8 = arith.constant 0.000000e+00 : f32
    %15 = vector.broadcast %cst_8 : f32 to vector<8x128xf32>
    %16 = arith.cmpf ogt, %14, %15 : vector<8x128xf32>
    %cst_9 = arith.constant 2.000000e-01 : f32
    %17 = vector.broadcast %cst_9 : f32 to vector<8x128xf32>
    %18 = arith.mulf %17, %14 : vector<8x128xf32>
    %19 = arith.select %16, %14, %18 : vector<8x128xi1>, vector<8x128xf32>
    %20 = arith.truncf %19 : vector<8x128xf32> to vector<8x128xbf16>
    %c0_10 = arith.constant 0 : index
    %c0_11 = arith.constant 0 : index
    %21 = vector.load %arg4[%c0_10, %c0_11] : memref<128x128xbf16, #tpu.memory_space<vmem>>, vector<128x128xbf16>
    %cst_12 = arith.constant dense<0.000000e+00> : vector<8x128xf32>
    %22 = tpu.matmul %20, %21, %cst_12 {dimension_numbers = #tpu.dot_dimension_numbers<[1], [0], [0], [1], [0, 0, 1, 1], [], []>} : vector<8x128xbf16>, vector<128x128xbf16>, vector<8x128xf32> -> vector<8x128xf32>
    %23 = vector.broadcast %3 : vector<8x1xf32> to vector<8x128xf32>
    %24 = arith.mulf %23, %22 : vector<8x128xf32>
    %25 = arith.truncf %24 : vector<8x128xf32> to vector<8x128xbf16>
    %cst_13 = arith.constant dense<0.000000e+00> : vector<8x128xf32>
    %26 = tpu.matmul %4, %25, %cst_13 {dimension_numbers = #tpu.dot_dimension_numbers<[0], [0], [1], [1], [0, 1, 1, 1], [], []>} : vector<8x8xbf16>, vector<8x128xbf16>, vector<8x128xf32> -> vector<8x128xf32>
    %27 = vector.broadcast %3 : vector<8x1xf32> to vector<8x128xf32>
    %28 = arith.mulf %27, %26 : vector<8x128xf32>
    %29 = arith.mulf %28, %28 : vector<8x128xf32>
    %cst_14 = arith.constant dense<0.000000e+00> : vector<8xf32>
    %30 = vector.multi_reduction <add>, %29, %cst_14 [1] : vector<8x128xf32> to vector<8xf32>
    %31 = vector.shape_cast %30 : vector<8xf32> to vector<8x1xf32>
    %32 = math.sqrt %31 : vector<8x1xf32>
    %cst_15 = arith.constant 9.99999996E-13 : f32
    %33 = vector.broadcast %cst_15 : f32 to vector<8x1xf32>
    %34 = arith.addf %32, %33 : vector<8x1xf32>
    %35 = tpu.reciprocal %34 {approx = true} : vector<8x1xf32> -> vector<8x1xf32>
    %36 = vector.broadcast %35 : vector<8x1xf32> to vector<8x128xf32>
    %37 = arith.mulf %28, %36 : vector<8x128xf32>
    %c0_16 = arith.constant 0 : index
    %c0_17 = arith.constant 0 : index
    %c0_18 = arith.constant 0 : index
    %38 = vector.load %arg5[%c0_16, %c0_17, %c0_18] : memref<1x8x128xf32, #tpu.memory_space<vmem>>, vector<1x8x128xf32>
    %39 = vector.shape_cast %38 : vector<1x8x128xf32> to vector<8x128xf32>
    %40 = vector.shape_cast %37 : vector<8x128xf32> to vector<1x8x128xf32>
    tpu.vector_store %arg5[%c0_16, %c0_17, %c0_18], %40 {strides = array<i32>} : memref<1x8x128xf32, #tpu.memory_space<vmem>>, vector<1x8x128xf32>,
    return
  }
  func.func @transform_0(%arg0: i32) -> (i32, i32, i32) {
    %c0_i32 = arith.constant 0 : i32
    %c0_i32_0 = arith.constant 0 : i32
    %c0_i32_1 = arith.constant 0 : i32
    return %arg0, %c0_i32, %c0_i32_0 : i32, i32, i32
  }
  func.func @transform_1(%arg0: i32) -> (i32, i32) {
    %c0_i32 = arith.constant 0 : i32
    %c0_i32_0 = arith.constant 0 : i32
    %c0_i32_1 = arith.constant 0 : i32
    return %c0_i32, %c0_i32_0 : i32, i32
  }
  func.func @transform_2(%arg0: i32) -> (i32, i32) {
    %c0_i32 = arith.constant 0 : i32
    %c0_i32_0 = arith.constant 0 : i32
    %c0_i32_1 = arith.constant 0 : i32
    return %c0_i32, %c0_i32_0 : i32, i32
  }
  func.func @transform_3(%arg0: i32) -> (i32, i32) {
    %c0_i32 = arith.constant 0 : i32
    %c0_i32_0 = arith.constant 0 : i32
    %c0_i32_1 = arith.constant 0 : i32
    return %c0_i32, %c0_i32_0 : i32, i32
  }
  func.func @transform_4(%arg0: i32) -> (i32, i32, i32) {
    %c0_i32 = arith.constant 0 : i32
    %c0_i32_0 = arith.constant 0 : i32
    %c0_i32_1 = arith.constant 0 : i32
    return %arg0, %c0_i32, %c0_i32_0 : i32, i32, i32
  }
}

</mosaic_0001>

<llo_original>
// kernel: c_gcn_forward.1
$region0: #{c_gcn_forward.1}
  #allocation0 [shape = 'u32[]', space=smem, size = 0x4, offset = 0x4, fixed_abs, tag = 'smem constant byte address 0x4 - core index']
  #allocation1 [shape = 'u32[72,128]{1,0:T(1,128)}', space=vmem, size = 0x9000, scoped, tag = 'internal scratch']
  %s0 = inlined_call_operand.vmem [shape: bf16[2,8,128], index: 0, kind: input, shape index: {}]
  %s1 = inlined_call_operand.vmem [shape: f32[8,8], index: 1, kind: input, shape index: {}]
  %s2 = inlined_call_operand.vmem [shape: bf16[128,128], index: 2, kind: input, shape index: {}]
  %s3 = inlined_call_operand.vmem [shape: bf16[128,128], index: 3, kind: input, shape index: {}]
  %s4 = inlined_call_operand.hbm [shape: f32[2,8,128], index: 4, kind: output, shape index: {}]
  %s5 = sld [smem:[#allocation0]]
  $region49: #{c_gcn_forward.1} parent=0
    _
  %s7 = ssub.s32 1, %s5
  %s8 = scalar_select 0, %s7, %s5
  $region1: #{c_gcn_forward.1} parent=0
    #allocation2 [shape = 'u8[8192]{0}', space=vmem, size = 0x2000, scoped, tag = 'output window, operand 0']
    #allocation3 [shape = 's32[2]{0}', space=sflag, size = 0x8, scoped, tag = 'scoped memory for c_gcn_forward.1']
    %9 = vsyncpa [#allocation3], 0
    %s10 = scalar_lea.sflag [#allocation3], 1
    %11 = vsyncpa %s10, 0
    loop: start=0, step=1, limit=4
    $region2: #{c_gcn_forward.1} parent=1 // loop_pre_header
      _
    $region3: #{c_gcn_forward.1} parent=1 // loop_header
      %s13 = sphi 0, %s17
      %p14 = scmp.ge.s32.totalorder %s13, 4
      %s23 = sphi 0, %s25
      %s26 = sphi 0, %s23
      %s27 = sphi 0, %s26
      %s43 = sphi 0, %s27
      %s47 = sphi 0, %s47
      %s49 = sphi 0, %s47
      %s50 = sphi 0, %s49
      %s64 = sphi 0, %s50
      %s68 = sphi 0, %s68
      %s70 = sphi 0, %s68
      %s71 = sphi 0, %s70
      %s85 = sphi 0, %s71
      %s89 = sphi 0, %s89
      %s91 = sphi 0, %s89
      %s92 = sphi 0, %s91
      %s106 = sphi 0, %s92
      %s112 = sphi 0, %s114
      %s115 = sphi 0, %s112
      %s116 = sphi 0, %s115
      %s132 = sphi 0, %s116
    $region4: #{c_gcn_forward.1} parent=1 // loop_header_branch
      %16 = sbr.rel (%p14) target = $region8
    $region5: #{c_gcn_forward.1} parent=1 // loop_body
      %s18 = ssub.s32 %s13, 1
      %s19 = ssub.s32 %s13, 2
      %s20 = sadd.s32 %s13, 1
      %s21 = ssub.s32 %s13, %s20
      %p22 = scmp.eq.s32.totalorder %s21, 0
      %s24 = sadd.s32 %s23, 1
      %s25 = scalar_select %p22, %s23, %s24
      %p28 = pneg %p22
      %p29 = scmp.eq.s32.totalorder %s13, 1
      %p30 = por %p28, %p29
      %p31 = scmp.ne.s32.totalorder %s23, %s26
      %p32 = scmp.eq.s32.totalorder %s13, 0
      %p33 = por %p31, %p32
      %p34 = scmp.ne.s32.totalorder %s23, %s26
      %p35 = scmp.eq.s32.totalorder %s18, 1
      %p36 = por %p34, %p35
      %p37 = scmp.ne.s32.totalorder %s26, %s27
      %p38 = scmp.eq.s32.totalorder %s18, 0
      %p39 = por %p37, %p38
      %p40 = scmp.ne.s32.totalorder %s26, %s27
      %p41 = scmp.eq.s32.totalorder %s19, 1
      %p42 = por %p40, %p41
      %p44 = scmp.ne.s32.totalorder %s27, %s43
      %p45 = scmp.eq.s32.totalorder %s19, 0
      %p46 = por %p44, %p45
      %s48 = sadd.s32 %s47, 1
      %p51 = scmp.eq.s32.totalorder %s13, 1
      %p52 = scmp.ne.s32.totalorder %s47, %s49
      %p53 = scmp.eq.s32.totalorder %s13, 0
      %p54 = por %p52, %p53
      %p55 = scmp.ne.s32.totalorder %s47, %s49
      %p56 = scmp.eq.s32.totalorder %s18, 1
      %p57 = por %p55, %p56
      %p58 = scmp.ne.s32.totalorder %s49, %s50
      %p59 = scmp.eq.s32.totalorder %s18, 0
      %p60 = por %p58, %p59
      %p61 = scmp.ne.s32.totalorder %s49, %s50
      %p62 = scmp.eq.s32.totalorder %s19, 1
      %p63 = por %p61, %p62
      %p65 = scmp.ne.s32.totalorder %s50, %s64
      %p66 = scmp.eq.s32.totalorder %s19, 0
      %p67 = por %p65, %p66
      %s69 = sadd.s32 %s68, 1
      %p72 = scmp.eq.s32.totalorder %s13, 1
      %p73 = scmp.ne.s32.totalorder %s68, %s70
      %p74 = scmp.eq.s32.totalorder %s13, 0
      %p75 = por %p73, %p74
      %p76 = scmp.ne.s32.totalorder %s68, %s70
      %p77 = scmp.eq.s32.totalorder %s18, 1
      %p78 = por %p76, %p77
      %p79 = scmp.ne.s32.totalorder %s70, %s71
      %p80 = scmp.eq.s32.totalorder %s18, 0
      %p81 = por %p79, %p80
      %p82 = scmp.ne.s32.totalorder %s70, %s71
      %p83 = scmp.eq.s32.totalorder %s19, 1
      %p84 = por %p82, %p83
      %p86 = scmp.ne.s32.totalorder %s71, %s85
      %p87 = scmp.eq.s32.totalorder %s19, 0
      %p88 = por %p86, %p87
      %s90 = sadd.s32 %s89, 1
      %p93 = scmp.eq.s32.totalorder %s13, 1
      %p94 = scmp.ne.s32.totalorder %s89, %s91
      %p95 = scmp.eq.s32.totalorder %s13, 0
      %p96 = por %p94, %p95
      %p97 = scmp.ne.s32.totalorder %s89, %s91
      %p98 = scmp.eq.s32.totalorder %s18, 1
      %p99 = por %p97, %p98
      %p100 = scmp.ne.s32.totalorder %s91, %s92
      %p101 = scmp.eq.s32.totalorder %s18, 0
      %p102 = por %p100, %p101
      %p103 = scmp.ne.s32.totalorder %s91, %s92
      %p104 = scmp.eq.s32.totalorder %s19, 1
      %p105 = por %p103, %p104
      %p107 = scmp.ne.s32.totalorder %s92, %s106
      %p108 = scmp.eq.s32.totalorder %s19, 0
      %p109 = por %p107, %p108
      %s110 = ssub.s32 %s13, %s20
      %p111 = scmp.eq.s32.totalorder %s110, 0
      %s113 = sadd.s32 %s112, 1
      %s114 = scalar_select %p111, %s112, %s113
      %p117 = pneg %p111
      %p118 = scmp.eq.s32.totalorder %s13, 1
      %p119 = por %p117, %p118
      %p120 = scmp.ne.s32.totalorder %s112, %s115
      %p121 = scmp.eq.s32.totalorder %s13, 0
      %p122 = por %p120, %p121
      %p123 = scmp.ne.s32.totalorder %s112, %s115
      %p124 = scmp.eq.s32.totalorder %s18, 1
      %p125 = por %p123, %p124
      %p126 = scmp.ne.s32.totalorder %s115, %s116
      %p127 = scmp.eq.s32.totalorder %s18, 0
      %p128 = por %p126, %p127
      %p129 = scmp.ne.s32.totalorder %s115, %s116
      %p130 = scmp.eq.s32.totalorder %s19, 1
      %p131 = por %p129, %p130
      %p133 = scmp.ne.s32.totalorder %s116, %s132
      %p134 = scmp.eq.s32.totalorder %s19, 0
      %p135 = por %p133, %p134
      %p136 = scmp.le.s32.totalorder 1, %s13
      %p137 = scmp.lt.s32.totalorder %s13, 3
      %p138 = pnand %p136, %p137
      %p139 = pneg %p138
      // Predicated region
      $region9: #{c_gcn_forward.1} parent=5 // pred_check
        _
      $region10: #{c_gcn_forward.1} parent=5 // pred_check_branch
        %141 = sbr.rel (%p138) target = $region12
      $region11: #{c_gcn_forward.1} parent=5 // pred_region
        %s142 = ssub.s32 %s13, 1
        // Predicated region
        $region13: #{c_gcn_forward.1} parent=11 // pred_check
          %p143 = pneg %p60
        $region14: #{c_gcn_forward.1} parent=11 // pred_check_branch
          %145 = sbr.rel (%p143) target = $region16
        $region15: #{c_gcn_forward.1} parent=11 // pred_region
          _
        $region16: #{c_gcn_forward.1} parent=11 // pred_fallthru
          _
        // Predicated region
        $region17: #{c_gcn_forward.1} parent=11 // pred_check
          %p146 = pneg %p81
        $region18: #{c_gcn_forward.1} parent=11 // pred_check_branch
          %148 = sbr.rel (%p146) target = $region20
        $region19: #{c_gcn_forward.1} parent=11 // pred_region
          _
        $region20: #{c_gcn_forward.1} parent=11 // pred_fallthru
          _
        // Predicated region
        $region21: #{c_gcn_forward.1} parent=11 // pred_check
          %p149 = pneg %p102
        $region22: #{c_gcn_forward.1} parent=11 // pred_check_branch
          %151 = sbr.rel (%p149) target = $region24
        $region23: #{c_gcn_forward.1} parent=11 // pred_region
          _
        $region24: #{c_gcn_forward.1} parent=11 // pred_fallthru
          _
      $region12: #{c_gcn_forward.1} parent=5 // pred_fallthru
        _
      %p152 = scmp.lt.s32.totalorder %s13, 2
      // Predicated region
      $region25: #{c_gcn_forward.1} parent=5 // pred_check
        %p153 = pneg %p152
      $region26: #{c_gcn_forward.1} parent=5 // pred_check_branch
        %155 = sbr.rel (%p153) target = $region28
      $region27: #{c_gcn_forward.1} parent=5 // pred_region
        // Predicated region
        $region29: #{c_gcn_forward.1} parent=27 // pred_check
          %p156 = pneg %p33
        $region30: #{c_gcn_forward.1} parent=27 // pred_check_branch
          %158 = sbr.rel (%p156) target = $region32
        $region31: #{c_gcn_forward.1} parent=27 // pred_region
          %p159 = scmp.lt.s32.totalorder %s13, 1
          %s160 = scalar_select %p159, %s13, 1
          %s161 = smul.addr %s160, 4
          %s162 = scalar_lea.vmem %s0, %s161
        $region32: #{c_gcn_forward.1} parent=27 // pred_fallthru
          _
      $region28: #{c_gcn_forward.1} parent=5 // pred_fallthru
        _
      %p163 = scmp.le.s32.totalorder 1, %s13
      %p164 = scmp.lt.s32.totalorder %s13, 3
      %p165 = pnand %p163, %p164
      %p166 = pneg %p165
      // Predicated region
      $region33: #{c_gcn_forward.1} parent=5 // pred_check
        _
      $region34: #{c_gcn_forward.1} parent=5 // pred_check_branch
        %168 = sbr.rel (%p165) target = $region36
      $region35: #{c_gcn_forward.1} parent=5 // pred_region
        %s169 = ssub.s32 %s13, 1
        %p170 = scmp.lt.s32.totalorder %s18, 1
        %s171 = scalar_select %p170, %s18, 1
        %s172 = smul.addr %s171, 4
        %s173 = scalar_lea.vmem %s0, %s172
        %p174 = pneg %p39
        %p175 = pneg %p36
        %p176 = pneg %p60
        %p177 = pneg %p57
        %p178 = pneg %p81
        %p179 = pneg %p78
        %p180 = pneg %p102
        %p181 = pneg %p99
        %p182 = pneg %p128
        %p183 = pneg %p125
        %s184 = sand.u32 %s115, 1
        %s185 = scalar_lea.sflag [#allocation3], %s184
        %s186 = sand.u32 %s115, 1
        %s187 = smul.addr %s186, 8
        %s188 = scalar_lea.vmem [#allocation2], %s187
        %p189 = scmp.lt.s32.totalorder %s18, 1
        %s190 = scalar_select %p189, %s18, 1
        %s191 = smul.addr %s190, 4
        %s192 = scalar_lea.vmem %s0, %s191
        %v194 = vld [vmem:[%s1] sm:$0xff]
        %vm195 = vcmask 64512
        %v196 = vsel %vm195, %v194, 0.0
        %197 = vadd.xlane.f32.xlu0 %v196
        %v198 = vpop.xlane.xlu0 %197
        %v199 = vrsqrt.pop %v198
        %v200 = vmul.f32 %v199, %v198
        %v201 = vmul.f32 %v200, %v199
        %v202 = vmul.f32 0.5, %v201
        %v203 = vsub.f32 1.5, %v202
        %v204 = vmul.f32 %v199, %v203
        %vm205 = vweird.f32 %v198
        %vm206 = vweird.f32 %v199
        %vm207 = vmor %vm205, %vm206
        %v208 = vsel %vm207, %v199, %v204
        %v209 = vpack.c.bf16 %v194, %v194
        %v210 = vld [vmem:[%s192] sm:$0xf]
        %v211 = vld [vmem:[%s2] sm:$0xf]
        %v212 = vld [vmem:[%s2 + $0x4] sm:$0xf]
        %v213 = vld [vmem:[%s2 + $0x8] sm:$0xf]
        %v214 = vld [vmem:[%s2 + $0xc] sm:$0xf]
        %v215 = vld [vmem:[%s2 + $0x10] sm:$0xf]
        %v216 = vld [vmem:[%s2 + $0x14] sm:$0xf]
        %v217 = vld [vmem:[%s2 + $0x18] sm:$0xf]
        %v218 = vld [vmem:[%s2 + $0x1c] sm:$0xf]
        %v219 = vld [vmem:[%s2 + $0x20] sm:$0xf]
        %v220 = vld [vmem:[%s2 + $0x24] sm:$0xf]
        %v221 = vld [vmem:[%s2 + $0x28] sm:$0xf]
        %v222 = vld [vmem:[%s2 + $0x2c] sm:$0xf]
        %v223 = vld [vmem:[%s2 + $0x30] sm:$0xf]
        %v224 = vld [vmem:[%s2 + $0x34] sm:$0xf]
        %v225 = vld [vmem:[%s2 + $0x38] sm:$0xf]
        %v226 = vld [vmem:[%s2 + $0x3c] sm:$0xf]
        %v243 = vunpack.c.l.b16 %v211
        %v244 = vunpack.c.l.b16 %v212
        %v245 = vunpack.c.l.b16 %v213
        %v246 = vunpack.c.l.b16 %v214
        %v247 = vunpack.c.l.b16 %v215
        %v248 = vunpack.c.l.b16 %v216
        %v249 = vunpack.c.l.b16 %v217
        %v250 = vunpack.c.l.b16 %v218
        %v251 = vunpack.c.l.b16 %v219
        %v252 = vunpack.c.l.b16 %v220
        %v253 = vunpack.c.l.b16 %v221
        %v254 = vunpack.c.l.b16 %v222
        %v255 = vunpack.c.l.b16 %v223
        %v256 = vunpack.c.l.b16 %v224
        %v257 = vunpack.c.l.b16 %v225
        %v258 = vunpack.c.l.b16 %v226
        %v259 = vpack.c.b16 %v244, %v243
        %v260 = vpack.c.b16 %v246, %v245
        %v261 = vpack.c.b16 %v248, %v247
        %v262 = vpack.c.b16 %v250, %v249
        %v263 = vpack.c.b16 %v252, %v251
        %v264 = vpack.c.b16 %v254, %v253
        %v265 = vpack.c.b16 %v256, %v255
        %v266 = vpack.c.b16 %v258, %v257
        %275 = vmatpush.bf16.msra.mxu0 %v266
        %276 = vmatpush.bf16.msra.mxu0 %v265
        %277 = vmatpush.bf16.msra.mxu0 %v264
        %278 = vmatpush.bf16.msra.mxu0 %v263
        %279 = vmatpush.bf16.msra.mxu0 %v262
        %280 = vmatpush.bf16.msra.mxu0 %v261
        %281 = vmatpush.bf16.msra.mxu0 %v260
        %282 = vmatpush.bf16.msra.mxu0 %v259
        %283 = vmatmul.bf16.gmra.mxu0 %v210
        %v284 = vpop.f32.mrf.mxu0
        %v285 = vadd.f32 0.0, %v284
        %v286 = vpop.f32.mrf.mxu0
        %287 = vdwg.mxu0
        %v288 = vmul.f32 %v208, %v285
        %v289 = vpack.c.bf16 %v288, %v288
        %290 = vxpose.xlu0.c.b16.start [1/8] %v209, 128
        %291 = vxpose.xlu0.c.b16.cont [2/8] 0, 128
        %292 = vxpose.xlu0.c.b16.cont [3/8] 0, 128
        %293 = vxpose.xlu0.c.b16.cont [4/8] 0, 128
        %294 = vxpose.xlu0.c.b16.cont [5/8] 0, 128
        %295 = vxpose.xlu0.c.b16.cont [6/8] 0, 128
        %296 = vxpose.xlu0.c.b16.cont [7/8] 0, 128
        %297 = vxpose.xlu0.c.b16.end [8/8] 0, 128
        %v298 = vpop.trf.xlu0
        %v299 = vpop.trf.xlu0
        %v300 = vpop.trf.xlu0
        %v301 = vpop.trf.xlu0
        %v302 = vpop.trf.xlu0
        %v303 = vpop.trf.xlu0
        %v304 = vpop.trf.xlu0
        %v305 = vpop.trf.xlu0
        %v307 = vsel %vm195, %v298, 0
        %vm309 = vcmask 1043456
        %v311 = vsel %vm309, %v289, 0
        %313 = vmatpush.bf16.msra.mxu0 0
        %314 = vmatpush.bf16.msra.mxu0 0
        %315 = vmatpush.bf16.msra.mxu0 0
        %316 = vmatpush.bf16.msra.mxu0 0
        %317 = vmatpush.bf16.msra.mxu0 0
        %318 = vmatpush.bf16.msra.mxu0 0
        %319 = vmatpush.bf16.msra.mxu0 0
        %320 = vmatpush.bf16.msra.mxu0 %v311
        %321 = vmatmul.bf16.gmra.mxu0 %v307
        %v322 = vpop.f32.mrf.mxu0
        %v323 = vadd.f32 0.0, %v322
        %v324 = vpop.f32.mrf.mxu0
        %325 = vdwg.mxu0
        %v326 = vmul.f32 %v208, %v323
        %vm327 = vcmp.gt.f32.partialorder %v326, 0.0
        %v328 = vmul.f32 %v326, 0.2
        %v329 = vsel %vm327, %v326, %v328
        %v330 = vpack.c.bf16 %v329, %v329
        %v331 = vld [vmem:[%s3] sm:$0xf]
        %v332 = vld [vmem:[%s3 + $0x4] sm:$0xf]
        %v333 = vld [vmem:[%s3 + $0x8] sm:$0xf]
        %v334 = vld [vmem:[%s3 + $0xc] sm:$0xf]
        %v335 = vld [vmem:[%s3 + $0x10] sm:$0xf]
        %v336 = vld [vmem:[%s3 + $0x14] sm:$0xf]
        %v337 = vld [vmem:[%s3 + $0x18] sm:$0xf]
        %v338 = vld [vmem:[%s3 + $0x1c] sm:$0xf]
        %v339 = vld [vmem:[%s3 + $0x20] sm:$0xf]
        %v340 = vld [vmem:[%s3 + $0x24] sm:$0xf]
        %v341 = vld [vmem:[%s3 + $0x28] sm:$0xf]
        %v342 = vld [vmem:[%s3 + $0x2c] sm:$0xf]
        %v343 = vld [vmem:[%s3 + $0x30] sm:$0xf]
        %v344 = vld [vmem:[%s3 + $0x34] sm:$0xf]
        %v345 = vld [vmem:[%s3 + $0x38] sm:$0xf]
        %v346 = vld [vmem:[%s3 + $0x3c] sm:$0xf]
        %v363 = vunpack.c.l.b16 %v331
        %v364 = vunpack.c.l.b16 %v332
        %v365 = vunpack.c.l.b16 %v333
        %v366 = vunpack.c.l.b16 %v334
        %v367 = vunpack.c.l.b16 %v335
        %v368 = vunpack.c.l.b16 %v336
        %v369 = vunpack.c.l.b16 %v337
        %v370 = vunpack.c.l.b16 %v338
        %v371 = vunpack.c.l.b16 %v339
        %v372 = vunpack.c.l.b16 %v340
        %v373 = vunpack.c.l.b16 %v341
        %v374 = vunpack.c.l.b16 %v342
        %v375 = vunpack.c.l.b16 %v343
        %v376 = vunpack.c.l.b16 %v344
        %v377 = vunpack.c.l.b16 %v345
        %v378 = vunpack.c.l.b16 %v346
        %v379 = vpack.c.b16 %v364, %v363
        %v380 = vpack.c.b16 %v366, %v365
        %v381 = vpack.c.b16 %v368, %v367
        %v382 = vpack.c.b16 %v370, %v369
        %v383 = vpack.c.b16 %v372, %v371
        %v384 = vpack.c.b16 %v374, %v373
        %v385 = vpack.c.b16 %v376, %v375
        %v386 = vpack.c.b16 %v378, %v377
        %395 = vmatpush.bf16.msra.mxu0 %v386
        %396 = vmatpush.bf16.msra.mxu0 %v385
        %397 = vmatpush.bf16.msra.mxu0 %v384
        %398 = vmatpush.bf16.msra.mxu0 %v383
        %399 = vmatpush.bf16.msra.mxu0 %v382
        %400 = vmatpush.bf16.msra.mxu0 %v381
        %401 = vmatpush.bf16.msra.mxu0 %v380
        %402 = vmatpush.bf16.msra.mxu0 %v379
        %403 = vmatmul.bf16.gmra.mxu0 %v330
        %v404 = vpop.f32.mrf.mxu0
        %v405 = vadd.f32 0.0, %v404
        %v406 = vpop.f32.mrf.mxu0
        %407 = vdwg.mxu0
        %v408 = vmul.f32 %v208, %v405
        %v409 = vpack.c.bf16 %v408, %v408
        %v411 = vsel %vm309, %v409, 0
        %413 = vmatpush.bf16.msra.mxu0 0
        %414 = vmatpush.bf16.msra.mxu0 0
        %415 = vmatpush.bf16.msra.mxu0 0
        %416 = vmatpush.bf16.msra.mxu0 0
        %417 = vmatpush.bf16.msra.mxu0 0
        %418 = vmatpush.bf16.msra.mxu0 0
        %419 = vmatpush.bf16.msra.mxu0 0
        %420 = vmatpush.bf16.msra.mxu0 %v411
        %421 = vmatmul.bf16.gmra.mxu0 %v307
        %v422 = vpop.f32.mrf.mxu0
        %v423 = vadd.f32 0.0, %v422
        %v424 = vpop.f32.mrf.mxu0
        %425 = vdwg.mxu0
        %v426 = vmul.f32 %v208, %v423
        %v427 = vmul.f32 %v426, %v426
        %428 = vadd.xlane.f32.xlu0 %v427
        %v429 = vpop.xlane.xlu0 %428
        %v430 = vrsqrt.pop %v429
        %v431 = vmul.f32 %v430, %v429
        %v432 = vmul.f32 %v431, %v430
        %v433 = vmul.f32 0.5, %v432
        %v434 = vsub.f32 1.5, %v433
        %v435 = vmul.f32 %v430, %v434
        %v436 = vmul.f32 %v429, %v435
        %vm437 = vcmp.eq.f32.partialorder %v429, inf
        %v438 = vsel %vm437, %v429, %v436
        %vm439 = vcmp.eq.f32.partialorder %v429, 0.0
        %v440 = vand.u32 %v429, 2147483648
        %v441 = vsel %vm439, %v440, %v438
        %v442 = vadd.f32 %v441, 1e-12
        %v443 = vrcp.pop %v442
        %v444 = vmul.f32 %v426, %v443
        %445 = vst [vmem:[%s188] sm:$0xff] %v444
        %s446 = sand.u32 %s115, 1
        %s447 = scalar_lea.sflag [#allocation3], %s446
        %s448 = sand.u32 %s115, 1
        %s449 = smul.addr %s448, 8
        %s450 = scalar_lea.vmem [#allocation2], %s449
        // Predicated region
        $region37: #{c_gcn_forward.1} parent=35 // pred_check
          %p451 = pneg %p125
        $region38: #{c_gcn_forward.1} parent=35 // pred_check_branch
          %453 = sbr.rel (%p451) target = $region40
        $region39: #{c_gcn_forward.1} parent=35 // pred_region
          %455 = vsyncadd %s447, 0
          %s456 = smul.addr %s18, 8
          %s457 = scalar_lea.hbm %s4, %s456
          %s459 = sshll.u32 %s450, 4
          %s460 = int_to_ptr.vmem [resolvable:$true] %s459
          %s461 = sshll.u32 %s457, 4
          %s462 = int_to_ptr.hbm [resolvable:$true] %s461
          %464 = dma.vmem_to_hbm [thread:$0]  %s460, 128, %s462, %s447
        $region40: #{c_gcn_forward.1} parent=35 // pred_fallthru
          _
      $region36: #{c_gcn_forward.1} parent=5 // pred_fallthru
        _
      %p465 = scmp.le.s32.totalorder 2, %s13
      // Predicated region
      $region41: #{c_gcn_forward.1} parent=5 // pred_check
        %p466 = pneg %p465
      $region42: #{c_gcn_forward.1} parent=5 // pred_check_branch
        %468 = sbr.rel (%p466) target = $region44
      $region43: #{c_gcn_forward.1} parent=5 // pred_region
        %s469 = ssub.s32 %s13, 2
        // Predicated region
        $region45: #{c_gcn_forward.1} parent=43 // pred_check
          %p470 = pneg %p131
        $region46: #{c_gcn_forward.1} parent=43 // pred_check_branch
          %472 = sbr.rel (%p470) target = $region48
        $region47: #{c_gcn_forward.1} parent=43 // pred_region
          %s473 = sand.u32 %s116, 1
          %s474 = scalar_lea.sflag [#allocation3], %s473
          %s475 = sand.u32 %s116, 1
          %s476 = smul.addr %s475, 8
          %s477 = scalar_lea.vmem [#allocation2], %s476
          %479 = dma.done %s474, 128
        $region48: #{c_gcn_forward.1} parent=43 // pred_fallthru
          _
      $region44: #{c_gcn_forward.1} parent=5 // pred_fallthru
        _
    $region6: #{c_gcn_forward.1} parent=1 // loop_footer
      %s17 = sadd.s32 1, %s13
    $region7: #{c_gcn_forward.1} parent=1 // loop_footer_branch
      %12 = sbr.rel target = $region3
    $region8: #{c_gcn_forward.1} parent=1 // loop_exit
      _
    %480 = vsyncpa [#allocation3], 1
    %s481 = scalar_lea.sflag [#allocation3], 1
    %482 = vsyncpa %s481, 1

</llo_original>
